<compile_context>
chip_gen: v5e
topology: v5e:2x2
jax: 0.10.0
libtpu: 0.0.40
codegen_flags: <defaults>
</compile_context>

<pallas_src>
import functools

import jax
import jax.numpy as jnp
from jax.experimental import pallas as pl
from jax.experimental.pallas import tpu as pltpu


def _round_up(x, m):
    return ((x + m - 1) // m) * m


def _choose_block_m(n, block_m):
    """Pick the batch tile: large, 128-aligned, but keep >=2 grid steps on big batches."""
    n128 = _round_up(max(n, 1), 128)
    bm = min(_round_up(block_m, 128), n128)
    if n128 >= 256:
        # v7x has 2 TensorCores; keep at least 2 "parallel" grid steps.
        bm = min(bm, _round_up(n128 // 2, 128))
    return max(bm, 128)


def _mlp_kernel(x_ref, w1t_ref, b1_ref, w2t_ref, b2_ref, w3t_ref, b3_ref,
                o_ref, *, mat_dtype, epi_dtype):
    # x tile arrives in its native row-major (bm, d_in) layout.  Cast to the
    # matmul dtype on the VPU; the transpose is folded into the MXU pass by
    # contracting both operands' last dims -> feature-major (h1, bm).
    x = x_ref[...].astype(mat_dtype)                                    # (bm, d_in)

    h1 = jax.lax.dot_general(
        w1t_ref[...], x,
        dimension_numbers=(((1,), (1,)), ((), ())),
        preferred_element_type=jnp.float32)                             # (h1p, bm) f32 acc
    h1 = jnp.maximum(h1.astype(epi_dtype) + b1_ref[...], 0.0)           # bias + ReLU
    h1 = h1.astype(mat_dtype)

    h2 = jnp.dot(w2t_ref[...], h1, preferred_element_type=jnp.float32)  # (h2p, bm)
    h2 = jnp.maximum(h2.astype(epi_dtype) + b2_ref[...], 0.0)
    h2 = h2.astype(mat_dtype)

    out = jnp.dot(w3t_ref[...], h2, preferred_element_type=jnp.float32) # (d_out, bm)
    o_ref[...] = (out + b3_ref[...]).astype(o_ref.dtype)                # lane-dense store


@functools.partial(jax.jit,
                   static_argnames=("block_m", "use_bf16", "bf16_epilogue"))
def mlp_forward(x, w1, b1, w2, b2, w3, b3, *, block_m=4096, use_bf16=True,
                bf16_epilogue=True):
    """x: (N, d_in) f32; weights stored (in, out) so y = x @ W + b. Returns (N, d_out) f32.

    use_bf16=True runs the matmuls in bf16 (f32 MXU accumulation) -- matches
    the f32 reference to ~1e-2 relative.  bf16_epilogue=True also does the
    bias/ReLU math in bf16 (recommended on v6e/v7x; set False on v5e).
    """
    n, d_in = x.shape
    h1, h2 = w1.shape[1], w2.shape[1]
    d_out = w3.shape[1]

    mat_dtype = jnp.bfloat16 if use_bf16 else jnp.float32
    epi_dtype = jnp.bfloat16 if (use_bf16 and bf16_epilogue) else jnp.float32

    bm = _choose_block_m(n, block_m)
    grid = (pl.cdiv(n, bm),)

    # One-time prep of the tiny resident weights: transpose to feature-major
    # and zero-pad hidden dims to clean sublane tiles (exactness preserved:
    # zero rows/cols contribute nothing through relu/matmul).
    h1p, h2p = _round_up(h1, 64), _round_up(h2, 64)
    w1t = jnp.pad(w1.T, ((0, h1p - h1), (0, 0))).astype(mat_dtype)        # (h1p, d_in)
    w2t = jnp.pad(w2.T, ((0, h2p - h2), (0, h1p - h1))).astype(mat_dtype)  # (h2p, h1p)
    w3t = jnp.pad(w3.T, ((0, 0), (0, h2p - h2))).astype(mat_dtype)         # (d_out, h2p)
    b1c = jnp.pad(b1, (0, h1p - h1)).reshape(h1p, 1).astype(epi_dtype)
    b2c = jnp.pad(b2, (0, h2p - h2)).reshape(h2p, 1).astype(epi_dtype)
    b3c = b3.reshape(d_out, 1).astype(jnp.float32)

    full = lambda i: (0, 0)   # weights/biases: resident, fetched once

    kernel = functools.partial(_mlp_kernel, mat_dtype=mat_dtype,
                               epi_dtype=epi_dtype)

    out_t = pl.pallas_call(
        kernel,
        out_shape=jax.ShapeDtypeStruct((d_out, n), jnp.float32),
        grid_spec=pltpu.PrefetchScalarGridSpec(
            num_scalar_prefetch=0,
            grid=grid,
            in_specs=[
                pl.BlockSpec((bm, d_in), lambda i: (i, 0)),   # x: only streamed input
                pl.BlockSpec((h1p, d_in), full),              # W1^T
                pl.BlockSpec((h1p, 1), full),                 # b1
                pl.BlockSpec((h2p, h1p), full),               # W2^T
                pl.BlockSpec((h2p, 1), full),                 # b2
                pl.BlockSpec((d_out, h2p), full),             # W3^T
                pl.BlockSpec((d_out, 1), full),               # b3
            ],
            out_specs=pl.BlockSpec((d_out, bm), lambda i: (0, i)),
        ),
        compiler_params=pltpu.CompilerParams(
            dimension_semantics=("parallel",),   # batch tiles shard across TCs on v7x
        ),
    )(x, w1t, b1c, w2t, b2c, w3t, b3c)

    # Back to the PyTorch (N, d_out) layout (tiny: d_out == 1).
    return out_t.T


def init_params(key, input_dim, output_dim):
    # Deterministic synthetic parameters (shapes match the nn.Linear layers,
    # stored as (in, out) weights + (out,) biases so y = x @ W + b).
    h1, h2 = 50, 100
    ks = jax.random.split(key, 6)
    w1 = jax.random.normal(ks[0], (input_dim, h1), jnp.float32) * 0.1
    b1 = jax.random.normal(ks[1], (h1,), jnp.float32) * 0.1
    w2 = jax.random.normal(ks[2], (h1, h2), jnp.float32) * 0.1
    b2 = jax.random.normal(ks[3], (h2,), jnp.float32) * 0.1
    w3 = jax.random.normal(ks[4], (h2, output_dim), jnp.float32) * 0.1
    b3 = jax.random.normal(ks[5], (output_dim,), jnp.float32) * 0.1
    return w1, b1, w2, b2, w3, b3


def mlp_reference(x, w1, b1, w2, b2, w3, b3):
    h = jnp.maximum(x @ w1 + b1, 0.0)
    h = jnp.maximum(h @ w2 + b2, 0.0)
    return h @ w3 + b3


if __name__ == "__main__":
    key = jax.random.PRNGKey(0)
    k_x, k_x2, k_p = jax.random.split(key, 3)

    input_dim = 16     # number of housing-characteristic features
    output_dim = 1     # regression target
    params = init_params(k_p, input_dim, output_dim)

    # Small batch of tabular housing rows.
    batch = 8
    x = jax.random.normal(k_x, (batch, input_dim), jnp.float32)
    y_ref = mlp_reference(x, *params)

    # Pure-f32 path: tight tolerance.
    y_f32 = jax.block_until_ready(
        mlp_forward(x, *params, use_bf16=False, bf16_epilogue=False))
    assert y_f32.shape == (batch, output_dim)
    assert jnp.allclose(y_f32, y_ref, atol=1e-4, rtol=1e-4), "f32 mismatch vs reference"

    # Default bf16-matmul + bf16-epilogue path (v6e/v7x): loosened tolerance.
    y_bf16 = jax.block_until_ready(mlp_forward(x, *params))
    assert y_bf16.shape == (batch, output_dim)
    assert jnp.allclose(y_bf16, y_ref, atol=3e-2, rtol=3e-2), "bf16 mismatch vs reference"

    # Ragged multi-tile batch (exercises cdiv grid + masked last block).
    x_big = jax.random.normal(k_x2, (300, input_dim), jnp.float32)
    y_big = jax.block_until_ready(
        mlp_forward(x_big, *params, use_bf16=False, bf16_epilogue=False))
    assert y_big.shape == (300, output_dim)
    assert jnp.allclose(y_big, mlp_reference(x_big, *params), atol=1e-4, rtol=1e-4), \
        "ragged-batch mismatch vs reference"

    print("KERNEL_OK")
</pallas_src>

<mosaic_0001>
module attributes {stable_mosaic.version = 11 : i64} {
  func.func @_mlp_kernel(%arg0: i32, %arg1: memref<128x16xf32, #tpu.memory_space<vmem>>, %arg2: memref<64x16xf32, #tpu.memory_space<vmem>>, %arg3: memref<64x1xf32, #tpu.memory_space<vmem>>, %arg4: memref<128x64xf32, #tpu.memory_space<vmem>>, %arg5: memref<128x1xf32, #tpu.memory_space<vmem>>, %arg6: memref<1x128xf32, #tpu.memory_space<vmem>>, %arg7: memref<1x1xf32, #tpu.memory_space<vmem>>, %arg8: memref<1x128xf32, #tpu.memory_space<vmem>>) attributes {dimension_semantics = [#tpu.dimension_semantics<parallel>], iteration_bounds = array<i64: 1>, scalar_prefetch = 0 : i64, scratch_operands = 0 : i64, tpu.core_type = #tpu.core_type<tc>, window_params = [{transform_indices = @transform_0, window_bounds = array<i64: 128, 16>}, {pipeline_mode = #tpu.pipeline_mode<synchronous>, transform_indices = @transform_1, window_bounds = array<i64: 64, 16>}, {pipeline_mode = #tpu.pipeline_mode<synchronous>, transform_indices = @transform_2, window_bounds = array<i64: 64, 1>}, {pipeline_mode = #tpu.pipeline_mode<synchronous>, transform_indices = @transform_3, window_bounds = array<i64: 128, 64>}, {pipeline_mode = #tpu.pipeline_mode<synchronous>, transform_indices = @transform_4, window_bounds = array<i64: 128, 1>}, {pipeline_mode = #tpu.pipeline_mode<synchronous>, transform_indices = @transform_5, window_bounds = array<i64: 1, 128>}, {pipeline_mode = #tpu.pipeline_mode<synchronous>, transform_indices = @transform_6, window_bounds = array<i64: 1, 1>}, {transform_indices = @transform_7, window_bounds = array<i64: 1, 128>}]} {
    %c0 = arith.constant 0 : index
    %c0_0 = arith.constant 0 : index
    %0 = vector.load %arg1[%c0, %c0_0] : memref<128x16xf32, #tpu.memory_space<vmem>>, vector<128x16xf32>
    %c0_1 = arith.constant 0 : index
    %c0_2 = arith.constant 0 : index
    %1 = vector.load %arg2[%c0_1, %c0_2] : memref<64x16xf32, #tpu.memory_space<vmem>>, vector<64x16xf32>
    %cst = arith.constant dense<0.000000e+00> : vector<64x128xf32>
    %2 = tpu.matmul %1, %0, %cst {dimension_numbers = #tpu.dot_dimension_numbers<[1], [1], [0], [0], [0, 0, 1, 0], [], []>} : vector<64x16xf32>, vector<128x16xf32>, vector<64x128xf32> -> vector<64x128xf32>
    %c0_3 = arith.constant 0 : index
    %c0_4 = arith.constant 0 : index
    %3 = vector.load %arg3[%c0_3, %c0_4] : memref<64x1xf32, #tpu.memory_space<vmem>>, vector<64x1xf32>
    %4 = vector.broadcast %3 : vector<64x1xf32> to vector<64x128xf32>
    %5 = arith.addf %2, %4 : vector<64x128xf32>
    %cst_5 = arith.constant 0.000000e+00 : f32
    %6 = vector.broadcast %cst_5 : f32 to vector<64x128xf32>
    %7 = arith.maximumf %5, %6 : vector<64x128xf32>
    %c0_6 = arith.constant 0 : index
    %c0_7 = arith.constant 0 : index
    %8 = vector.load %arg4[%c0_6, %c0_7] : memref<128x64xf32, #tpu.memory_space<vmem>>, vector<128x64xf32>
    %cst_8 = arith.constant dense<0.000000e+00> : vector<128x128xf32>
    %9 = tpu.matmul %8, %7, %cst_8 {dimension_numbers = #tpu.dot_dimension_numbers<[1], [0], [0], [1], [0, 0, 1, 1], [], []>} : vector<128x64xf32>, vector<64x128xf32>, vector<128x128xf32> -> vector<128x128xf32>
    %c0_9 = arith.constant 0 : index
    %c0_10 = arith.constant 0 : index
    %10 = vector.load %arg5[%c0_9, %c0_10] : memref<128x1xf32, #tpu.memory_space<vmem>>, vector<128x1xf32>
    %11 = vector.broadcast %10 : vector<128x1xf32> to vector<128x128xf32>
    %12 = arith.addf %9, %11 : vector<128x128xf32>
    %cst_11 = arith.constant 0.000000e+00 : f32
    %13 = vector.broadcast %cst_11 : f32 to vector<128x128xf32>
    %14 = arith.maximumf %12, %13 : vector<128x128xf32>
    %c0_12 = arith.constant 0 : index
    %c0_13 = arith.constant 0 : index
    %15 = vector.load %arg6[%c0_12, %c0_13] : memref<1x128xf32, #tpu.memory_space<vmem>>, vector<1x128xf32>
    %cst_14 = arith.constant dense<0.000000e+00> : vector<1x128xf32>
    %16 = tpu.matmul %15, %14, %cst_14 {dimension_numbers = #tpu.dot_dimension_numbers<[1], [0], [0], [1], [0, 0, 1, 1], [], []>} : vector<1x128xf32>, vector<128x128xf32>, vector<1x128xf32> -> vector<1x128xf32>
    %c0_15 = arith.constant 0 : index
    %c0_16 = arith.constant 0 : index
    %17 = vector.load %arg7[%c0_15, %c0_16] : memref<1x1xf32, #tpu.memory_space<vmem>>, vector<1x1xf32>
    %18 = vector.broadcast %17 : vector<1x1xf32> to vector<1x128xf32>
    %19 = arith.addf %16, %18 : vector<1x128xf32>
    %c0_17 = arith.constant 0 : index
    %c0_18 = arith.constant 0 : index
    %20 = vector.load %arg8[%c0_17, %c0_18] : memref<1x128xf32, #tpu.memory_space<vmem>>, vector<1x128xf32>
    tpu.vector_store %arg8[%c0_17, %c0_18], %19 {strides = array<i32>} : memref<1x128xf32, #tpu.memory_space<vmem>>, vector<1x128xf32>,
    return
  }
  func.func @transform_0(%arg0: i32) -> (i32, i32) {
    %c0_i32 = arith.constant 0 : i32
    %c0_i32_0 = arith.constant 0 : i32
    return %arg0, %c0_i32 : i32, i32
  }
  func.func @transform_1(%arg0: i32) -> (i32, i32) {
    %c0_i32 = arith.constant 0 : i32
    %c0_i32_0 = arith.constant 0 : i32
    %c0_i32_1 = arith.constant 0 : i32
    return %c0_i32, %c0_i32_0 : i32, i32
  }
  func.func @transform_2(%arg0: i32) -> (i32, i32) {
    %c0_i32 = arith.constant 0 : i32
    %c0_i32_0 = arith.constant 0 : i32
    %c0_i32_1 = arith.constant 0 : i32
    return %c0_i32, %c0_i32_0 : i32, i32
  }
  func.func @transform_3(%arg0: i32) -> (i32, i32) {
    %c0_i32 = arith.constant 0 : i32
    %c0_i32_0 = arith.constant 0 : i32
    %c0_i32_1 = arith.constant 0 : i32
    return %c0_i32, %c0_i32_0 : i32, i32
  }
  func.func @transform_4(%arg0: i32) -> (i32, i32) {
    %c0_i32 = arith.constant 0 : i32
    %c0_i32_0 = arith.constant 0 : i32
    %c0_i32_1 = arith.constant 0 : i32
    return %c0_i32, %c0_i32_0 : i32, i32
  }
  func.func @transform_5(%arg0: i32) -> (i32, i32) {
    %c0_i32 = arith.constant 0 : i32
    %c0_i32_0 = arith.constant 0 : i32
    %c0_i32_1 = arith.constant 0 : i32
    return %c0_i32, %c0_i32_0 : i32, i32
  }
  func.func @transform_6(%arg0: i32) -> (i32, i32) {
    %c0_i32 = arith.constant 0 : i32
    %c0_i32_0 = arith.constant 0 : i32
    %c0_i32_1 = arith.constant 0 : i32
    return %c0_i32, %c0_i32_0 : i32, i32
  }
  func.func @transform_7(%arg0: i32) -> (i32, i32) {
    %c0_i32 = arith.constant 0 : i32
    %c0_i32_0 = arith.constant 0 : i32
    return %c0_i32, %arg0 : i32, i32
  }
}

</mosaic_0001>

<llo_original>
// kernel: mlp_forward.1
$region0: #{mlp_forward.1}
  #allocation0 [shape = 'u32[]', space=smem, size = 0x4, offset = 0x4, fixed_abs, tag = 'smem constant byte address 0x4 - core index']
  #allocation1 [shape = 'u32[72,128]{1,0:T(1,128)}', space=vmem, size = 0x9000, scoped, tag = 'internal scratch']
  #allocation2 [shape = 'f32[1,1]{1,0:T(1,128)S(1)}', space=vmem, size = 0x200, scoped, tag = 'scoped memory for mlp_forward.1']
  %s0 = inlined_call_operand.vmem [shape: f32[8,16], index: 0, kind: input, shape index: {}]
  %s1 = inlined_call_operand.vmem [shape: f32[64,16], index: 1, kind: input, shape index: {}]
  %s2 = inlined_call_operand.vmem [shape: f32[64,1], index: 2, kind: input, shape index: {}]
  %s3 = inlined_call_operand.vmem [shape: f32[128,64], index: 3, kind: input, shape index: {}]
  %s4 = inlined_call_operand.vmem [shape: f32[128,1], index: 4, kind: input, shape index: {}]
  %s5 = inlined_call_operand.vmem [shape: f32[1,128], index: 5, kind: input, shape index: {}]
  %s6 = inlined_call_operand.<no memory space> [shape: f32[1,1], index: 6, kind: input, shape index: {}]
  %s7 = inlined_call_operand.hbm [shape: f32[1,8], index: 7, kind: output, shape index: {}]
  %s8 = sld [smem:[#allocation0]]
  $region38: #{mlp_forward.1} parent=0
    _
  %s10 = ssub.s32 1, %s8
  %s11 = scalar_select 0, %s10, %s8
  %v12 = vstv %s6
  %13 = vst [vmem:[#allocation2] sm:$0x1] %v12
  $region1: #{mlp_forward.1} parent=0
    #allocation3 [shape = 'u8[512]{0}', space=vmem, size = 0x400, scoped, tag = 'output window, operand 0, single buffered']
    #allocation4 [shape = 's32[1]{0}', space=sflag, size = 0x4, scoped, tag = 'scoped memory for mlp_forward.1']
    %14 = vsyncpa [#allocation4], 0
    // Predicated region
    $region2: #{mlp_forward.1} parent=1 // pred_check
      _
    $region3: #{mlp_forward.1} parent=1 // pred_check_branch
      %16 = sbr.rel (0) target = $region5
    $region4: #{mlp_forward.1} parent=1 // pred_region
      _
    $region5: #{mlp_forward.1} parent=1 // pred_fallthru
      _
    // Predicated region
    $region6: #{mlp_forward.1} parent=1 // pred_check
      _
    $region7: #{mlp_forward.1} parent=1 // pred_check_branch
      %18 = sbr.rel (0) target = $region9
    $region8: #{mlp_forward.1} parent=1 // pred_region
      _
    $region9: #{mlp_forward.1} parent=1 // pred_fallthru
      _
    // Predicated region
    $region10: #{mlp_forward.1} parent=1 // pred_check
      _
    $region11: #{mlp_forward.1} parent=1 // pred_check_branch
      %20 = sbr.rel (0) target = $region13
    $region12: #{mlp_forward.1} parent=1 // pred_region
      _
    $region13: #{mlp_forward.1} parent=1 // pred_fallthru
      _
    // Predicated region
    $region14: #{mlp_forward.1} parent=1 // pred_check
      _
    $region15: #{mlp_forward.1} parent=1 // pred_check_branch
      %22 = sbr.rel (0) target = $region17
    $region16: #{mlp_forward.1} parent=1 // pred_region
      _
    $region17: #{mlp_forward.1} parent=1 // pred_fallthru
      _
    // Predicated region
    $region18: #{mlp_forward.1} parent=1 // pred_check
      _
    $region19: #{mlp_forward.1} parent=1 // pred_check_branch
      %24 = sbr.rel (0) target = $region21
    $region20: #{mlp_forward.1} parent=1 // pred_region
      _
    $region21: #{mlp_forward.1} parent=1 // pred_fallthru
      _
    // Predicated region
    $region22: #{mlp_forward.1} parent=1 // pred_check
      _
    $region23: #{mlp_forward.1} parent=1 // pred_check_branch
      %26 = sbr.rel (0) target = $region25
    $region24: #{mlp_forward.1} parent=1 // pred_region
      _
    $region25: #{mlp_forward.1} parent=1 // pred_fallthru
      _
    // Predicated region
    $region26: #{mlp_forward.1} parent=1 // pred_check
      _
    $region27: #{mlp_forward.1} parent=1 // pred_check_branch
      %28 = sbr.rel (0) target = $region29
    $region28: #{mlp_forward.1} parent=1 // pred_region
      _
    $region29: #{mlp_forward.1} parent=1 // pred_fallthru
      _
    %v29 = vld [vmem:[%s0] sm:$0xff]
    %v30 = vld [vmem:[%s0 + $0x8] sm:$0xff]
    %v31 = vld [vmem:[%s0 + $0x10] sm:$0xff]
    %v32 = vld [vmem:[%s0 + $0x18] sm:$0xff]
    %v33 = vld [vmem:[%s0 + $0x20] sm:$0xff]
    %v34 = vld [vmem:[%s0 + $0x28] sm:$0xff]
    %v35 = vld [vmem:[%s0 + $0x30] sm:$0xff]
    %v36 = vld [vmem:[%s0 + $0x38] sm:$0xff]
    %v37 = vld [vmem:[%s0 + $0x40] sm:$0xff]
    %v38 = vld [vmem:[%s0 + $0x48] sm:$0xff]
    %v39 = vld [vmem:[%s0 + $0x50] sm:$0xff]
    %v40 = vld [vmem:[%s0 + $0x58] sm:$0xff]
    %v41 = vld [vmem:[%s0 + $0x60] sm:$0xff]
    %v42 = vld [vmem:[%s0 + $0x68] sm:$0xff]
    %v43 = vld [vmem:[%s0 + $0x70] sm:$0xff]
    %v44 = vld [vmem:[%s0 + $0x78] sm:$0xff]
    %v45 = vld [vmem:[%s1] sm:$0xff]
    %v46 = vld [vmem:[%s1 + $0x8] sm:$0xff]
    %v47 = vld [vmem:[%s1 + $0x10] sm:$0xff]
    %v48 = vld [vmem:[%s1 + $0x18] sm:$0xff]
    %v49 = vld [vmem:[%s1 + $0x20] sm:$0xff]
    %v50 = vld [vmem:[%s1 + $0x28] sm:$0xff]
    %v51 = vld [vmem:[%s1 + $0x30] sm:$0xff]
    %v52 = vld [vmem:[%s1 + $0x38] sm:$0xff]
    %v53 = vld [vmem:[%s2] sm:$0xff]
    %v54 = vld [vmem:[%s2 + $0x8] sm:$0xff]
    %v55 = vld [vmem:[%s2 + $0x10] sm:$0xff]
    %v56 = vld [vmem:[%s2 + $0x18] sm:$0xff]
    %v57 = vld [vmem:[%s2 + $0x20] sm:$0xff]
    %v58 = vld [vmem:[%s2 + $0x28] sm:$0xff]
    %v59 = vld [vmem:[%s2 + $0x30] sm:$0xff]
    %v60 = vld [vmem:[%s2 + $0x38] sm:$0xff]
    %62 = vset.pattern.permute.xlu0 0
    %63 = vperm.xlu0 %62, %v53
    %v64 = vpop.permute.xlu0 %63
    %67 = vset.pattern.permute.xlu0 0
    %68 = vperm.xlu0 %67, %v54
    %v69 = vpop.permute.xlu0 %68
    %72 = vset.pattern.permute.xlu0 0
    %73 = vperm.xlu0 %72, %v55
    %v74 = vpop.permute.xlu0 %73
    %77 = vset.pattern.permute.xlu0 0
    %78 = vperm.xlu0 %77, %v56
    %v79 = vpop.permute.xlu0 %78
    %82 = vset.pattern.permute.xlu0 0
    %83 = vperm.xlu0 %82, %v57
    %v84 = vpop.permute.xlu0 %83
    %87 = vset.pattern.permute.xlu0 0
    %88 = vperm.xlu0 %87, %v58
    %v89 = vpop.permute.xlu0 %88
    %92 = vset.pattern.permute.xlu0 0
    %93 = vperm.xlu0 %92, %v59
    %v94 = vpop.permute.xlu0 %93
    %97 = vset.pattern.permute.xlu0 0
    %98 = vperm.xlu0 %97, %v60
    %v99 = vpop.permute.xlu0 %98
    %vm101 = vcmask 130048
    %v103 = vsel %vm101, %v45, 0
    %v106 = vsel %vm101, %v46, 0
    %v109 = vsel %vm101, %v47, 0
    %v112 = vsel %vm101, %v48, 0
    %v115 = vsel %vm101, %v49, 0
    %v118 = vsel %vm101, %v50, 0
    %v121 = vsel %vm101, %v51, 0
    %v124 = vsel %vm101, %v52, 0
    %v127 = vsel %vm101, %v29, 0
    %v130 = vsel %vm101, %v30, 0
    %v133 = vsel %vm101, %v31, 0
    %v136 = vsel %vm101, %v32, 0
    %v139 = vsel %vm101, %v33, 0
    %v142 = vsel %vm101, %v34, 0
    %v145 = vsel %vm101, %v35, 0
    %v148 = vsel %vm101, %v36, 0
    %v151 = vsel %vm101, %v37, 0
    %v154 = vsel %vm101, %v38, 0
    %v157 = vsel %vm101, %v39, 0
    %v160 = vsel %vm101, %v40, 0
    %v163 = vsel %vm101, %v41, 0
    %v166 = vsel %vm101, %v42, 0
    %v169 = vsel %vm101, %v43, 0
    %v172 = vsel %vm101, %v44, 0
    %174 = vmatpush.xpose.msra.mxu0 %v172
    %175 = vmatpush.xpose.msra.mxu0 %v169
    %176 = vmatpush.xpose.msra.mxu0 %v166
    %177 = vmatpush.xpose.msra.mxu0 %v163
    %178 = vmatpush.xpose.msra.mxu0 %v160
    %179 = vmatpush.xpose.msra.mxu0 %v157
    %180 = vmatpush.xpose.msra.mxu0 %v154
    %181 = vmatpush.xpose.msra.mxu0 %v151
    %182 = vmatpush.xpose.msra.mxu0 %v148
    %183 = vmatpush.xpose.msra.mxu0 %v145
    %184 = vmatpush.xpose.msra.mxu0 %v142
    %185 = vmatpush.xpose.msra.mxu0 %v139
    %186 = vmatpush.xpose.msra.mxu0 %v136
    %187 = vmatpush.xpose.msra.mxu0 %v133
    %188 = vmatpush.xpose.msra.mxu0 %v130
    %189 = vmatpush.xpose.msra.mxu0 %v127
    %190 = vmatmul.f32.gmra.mxu0 %v103
    %v191 = vpop.f32.mrf.mxu0
    %v192 = vadd.f32 %v64, %v191
    %193 = vmatmul.f32.gmra.mxu0 %v106
    %v194 = vpop.f32.mrf.mxu0
    %v195 = vadd.f32 %v69, %v194
    %196 = vmatmul.f32.gmra.mxu0 %v109
    %v197 = vpop.f32.mrf.mxu0
    %v198 = vadd.f32 %v74, %v197
    %199 = vmatmul.f32.gmra.mxu0 %v112
    %v200 = vpop.f32.mrf.mxu0
    %v201 = vadd.f32 %v79, %v200
    %202 = vmatmul.f32.gmra.mxu0 %v115
    %v203 = vpop.f32.mrf.mxu0
    %v204 = vadd.f32 %v84, %v203
    %205 = vmatmul.f32.gmra.mxu0 %v118
    %v206 = vpop.f32.mrf.mxu0
    %v207 = vadd.f32 %v89, %v206
    %208 = vmatmul.f32.gmra.mxu0 %v121
    %v209 = vpop.f32.mrf.mxu0
    %v210 = vadd.f32 %v94, %v209
    %211 = vmatmul.f32.gmra.mxu0 %v124
    %v212 = vpop.f32.mrf.mxu0
    %v213 = vadd.f32 %v99, %v212
    %214 = vdwg.mxu0
    %v215 = vmax.f32 %v192, 0.0
    %v216 = vmax.f32 %v195, 0.0
    %v217 = vmax.f32 %v198, 0.0
    %v218 = vmax.f32 %v201, 0.0
    %v219 = vmax.f32 %v204, 0.0
    %v220 = vmax.f32 %v207, 0.0
    %v221 = vmax.f32 %v210, 0.0
    %v222 = vmax.f32 %v213, 0.0
    %v223 = vld [vmem:[%s3] sm:$0xff]
    %v224 = vld [vmem:[%s3 + $0x8] sm:$0xff]
    %v225 = vld [vmem:[%s3 + $0x10] sm:$0xff]
    %v226 = vld [vmem:[%s3 + $0x18] sm:$0xff]
    %v227 = vld [vmem:[%s3 + $0x20] sm:$0xff]
    %v228 = vld [vmem:[%s3 + $0x28] sm:$0xff]
    %v229 = vld [vmem:[%s3 + $0x30] sm:$0xff]
    %v230 = vld [vmem:[%s3 + $0x38] sm:$0xff]
    %v231 = vld [vmem:[%s3 + $0x40] sm:$0xff]
    %v232 = vld [vmem:[%s3 + $0x48] sm:$0xff]
    %v233 = vld [vmem:[%s3 + $0x50] sm:$0xff]
    %v234 = vld [vmem:[%s3 + $0x58] sm:$0xff]
    %v235 = vld [vmem:[%s3 + $0x60] sm:$0xff]
    %v236 = vld [vmem:[%s3 + $0x68] sm:$0xff]
    %v237 = vld [vmem:[%s3 + $0x70] sm:$0xff]
    %v238 = vld [vmem:[%s3 + $0x78] sm:$0xff]
    %v239 = vld [vmem:[%s4] sm:$0xff]
    %v240 = vld [vmem:[%s4 + $0x8] sm:$0xff]
    %v241 = vld [vmem:[%s4 + $0x10] sm:$0xff]
    %v242 = vld [vmem:[%s4 + $0x18] sm:$0xff]
    %v243 = vld [vmem:[%s4 + $0x20] sm:$0xff]
    %v244 = vld [vmem:[%s4 + $0x28] sm:$0xff]
    %v245 = vld [vmem:[%s4 + $0x30] sm:$0xff]
    %v246 = vld [vmem:[%s4 + $0x38] sm:$0xff]
    %v247 = vld [vmem:[%s4 + $0x40] sm:$0xff]
    %v248 = vld [vmem:[%s4 + $0x48] sm:$0xff]
    %v249 = vld [vmem:[%s4 + $0x50] sm:$0xff]
    %v250 = vld [vmem:[%s4 + $0x58] sm:$0xff]
    %v251 = vld [vmem:[%s4 + $0x60] sm:$0xff]
    %v252 = vld [vmem:[%s4 + $0x68] sm:$0xff]
    %v253 = vld [vmem:[%s4 + $0x70] sm:$0xff]
    %v254 = vld [vmem:[%s4 + $0x78] sm:$0xff]
    %256 = vset.pattern.permute.xlu0 0
    %257 = vperm.xlu0 %256, %v239
    %v258 = vpop.permute.xlu0 %257
    %261 = vset.pattern.permute.xlu0 0
    %262 = vperm.xlu0 %261, %v240
    %v263 = vpop.permute.xlu0 %262
    %266 = vset.pattern.permute.xlu0 0
    %267 = vperm.xlu0 %266, %v241
    %v268 = vpop.permute.xlu0 %267
    %271 = vset.pattern.permute.xlu0 0
    %272 = vperm.xlu0 %271, %v242
    %v273 = vpop.permute.xlu0 %272
    %276 = vset.pattern.permute.xlu0 0
    %277 = vperm.xlu0 %276, %v243
    %v278 = vpop.permute.xlu0 %277
    %281 = vset.pattern.permute.xlu0 0
    %282 = vperm.xlu0 %281, %v244
    %v283 = vpop.permute.xlu0 %282
    %286 = vset.pattern.permute.xlu0 0
    %287 = vperm.xlu0 %286, %v245
    %v288 = vpop.permute.xlu0 %287
    %291 = vset.pattern.permute.xlu0 0
    %292 = vperm.xlu0 %291, %v246
    %v293 = vpop.permute.xlu0 %292
    %296 = vset.pattern.permute.xlu0 0
    %297 = vperm.xlu0 %296, %v247
    %v298 = vpop.permute.xlu0 %297
    %301 = vset.pattern.permute.xlu0 0
    %302 = vperm.xlu0 %301, %v248
    %v303 = vpop.permute.xlu0 %302
    %306 = vset.pattern.permute.xlu0 0
    %307 = vperm.xlu0 %306, %v249
    %v308 = vpop.permute.xlu0 %307
    %311 = vset.pattern.permute.xlu0 0
    %312 = vperm.xlu0 %311, %v250
    %v313 = vpop.permute.xlu0 %312
    %316 = vset.pattern.permute.xlu0 0
    %317 = vperm.xlu0 %316, %v251
    %v318 = vpop.permute.xlu0 %317
    %321 = vset.pattern.permute.xlu0 0
    %322 = vperm.xlu0 %321, %v252
    %v323 = vpop.permute.xlu0 %322
    %326 = vset.pattern.permute.xlu0 0
    %327 = vperm.xlu0 %326, %v253
    %v328 = vpop.permute.xlu0 %327
    %331 = vset.pattern.permute.xlu0 0
    %332 = vperm.xlu0 %331, %v254
    %v333 = vpop.permute.xlu0 %332
    %vm335 = vcmask 523264
    %v337 = vsel %vm335, %v223, 0
    %v340 = vsel %vm335, %v224, 0
    %v343 = vsel %vm335, %v225, 0
    %v346 = vsel %vm335, %v226, 0
    %v349 = vsel %vm335, %v227, 0
    %v352 = vsel %vm335, %v228, 0
    %v355 = vsel %vm335, %v229, 0
    %v358 = vsel %vm335, %v230, 0
    %v361 = vsel %vm335, %v231, 0
    %v364 = vsel %vm335, %v232, 0
    %v367 = vsel %vm335, %v233, 0
    %v370 = vsel %vm335, %v234, 0
    %v373 = vsel %vm335, %v235, 0
    %v376 = vsel %vm335, %v236, 0
    %v379 = vsel %vm335, %v237, 0
    %v382 = vsel %vm335, %v238, 0
    %384 = vmatpush.msra.mxu0 0.0
    %385 = vmatpush.msra.mxu0 0.0
    %386 = vmatpush.msra.mxu0 0.0
    %387 = vmatpush.msra.mxu0 0.0
    %388 = vmatpush.msra.mxu0 0.0
    %389 = vmatpush.msra.mxu0 0.0
    %390 = vmatpush.msra.mxu0 0.0
    %391 = vmatpush.msra.mxu0 0.0
    %392 = vmatpush.msra.mxu0 %v222
    %393 = vmatpush.msra.mxu0 %v221
    %394 = vmatpush.msra.mxu0 %v220
    %395 = vmatpush.msra.mxu0 %v219
    %396 = vmatpush.msra.mxu0 %v218
    %397 = vmatpush.msra.mxu0 %v217
    %398 = vmatpush.msra.mxu0 %v216
    %399 = vmatpush.msra.mxu0 %v215
    %400 = vmatmul.f32.gmra.mxu0 %v337
    %v401 = vpop.f32.mrf.mxu0
    %v402 = vadd.f32 %v258, %v401
    %403 = vmatmul.f32.gmra.mxu0 %v340
    %v404 = vpop.f32.mrf.mxu0
    %v405 = vadd.f32 %v263, %v404
    %406 = vmatmul.f32.gmra.mxu0 %v343
    %v407 = vpop.f32.mrf.mxu0
    %v408 = vadd.f32 %v268, %v407
    %409 = vmatmul.f32.gmra.mxu0 %v346
    %v410 = vpop.f32.mrf.mxu0
    %v411 = vadd.f32 %v273, %v410
    %412 = vmatmul.f32.gmra.mxu0 %v349
    %v413 = vpop.f32.mrf.mxu0
    %v414 = vadd.f32 %v278, %v413
    %415 = vmatmul.f32.gmra.mxu0 %v352
    %v416 = vpop.f32.mrf.mxu0
    %v417 = vadd.f32 %v283, %v416
    %418 = vmatmul.f32.gmra.mxu0 %v355
    %v419 = vpop.f32.mrf.mxu0
    %v420 = vadd.f32 %v288, %v419
    %421 = vmatmul.f32.gmra.mxu0 %v358
    %v422 = vpop.f32.mrf.mxu0
    %v423 = vadd.f32 %v293, %v422
    %424 = vmatmul.f32.gmra.mxu0 %v361
    %v425 = vpop.f32.mrf.mxu0
    %v426 = vadd.f32 %v298, %v425
    %427 = vmatmul.f32.gmra.mxu0 %v364
    %v428 = vpop.f32.mrf.mxu0
    %v429 = vadd.f32 %v303, %v428
    %430 = vmatmul.f32.gmra.mxu0 %v367
    %v431 = vpop.f32.mrf.mxu0
    %v432 = vadd.f32 %v308, %v431
    %433 = vmatmul.f32.gmra.mxu0 %v370
    %v434 = vpop.f32.mrf.mxu0
    %v435 = vadd.f32 %v313, %v434
    %436 = vmatmul.f32.gmra.mxu0 %v373
    %v437 = vpop.f32.mrf.mxu0
    %v438 = vadd.f32 %v318, %v437
    %439 = vmatmul.f32.gmra.mxu0 %v376
    %v440 = vpop.f32.mrf.mxu0
    %v441 = vadd.f32 %v323, %v440
    %442 = vmatmul.f32.gmra.mxu0 %v379
    %v443 = vpop.f32.mrf.mxu0
    %v444 = vadd.f32 %v328, %v443
    %445 = vmatmul.f32.gmra.mxu0 %v382
    %v446 = vpop.f32.mrf.mxu0
    %v447 = vadd.f32 %v333, %v446
    %448 = vdwg.mxu0
    %v449 = vmax.f32 %v402, 0.0
    %v450 = vmax.f32 %v405, 0.0
    %v451 = vmax.f32 %v408, 0.0
    %v452 = vmax.f32 %v411, 0.0
    %v453 = vmax.f32 %v414, 0.0
    %v454 = vmax.f32 %v417, 0.0
    %v455 = vmax.f32 %v420, 0.0
    %v456 = vmax.f32 %v423, 0.0
    %v457 = vmax.f32 %v426, 0.0
    %v458 = vmax.f32 %v429, 0.0
    %v459 = vmax.f32 %v432, 0.0
    %v460 = vmax.f32 %v435, 0.0
    %v461 = vmax.f32 %v438, 0.0
    %v462 = vmax.f32 %v441, 0.0
    %v463 = vmax.f32 %v444, 0.0
    %v464 = vmax.f32 %v447, 0.0
    %v465 = vld [vmem:[%s5] sm:$0x1]
    %v466 = vld [vmem:[#allocation2] sm:$0x1]
    %468 = vset.pattern.permute.xlu0 0
    %469 = vperm.xlu0 %468, %v466
    %v470 = vpop.permute.xlu0 %469
    %v472 = vperm.slane %v470, 0
    %473 = vmatpush.msra.mxu0 %v464
    %474 = vmatpush.msra.mxu0 %v463
    %475 = vmatpush.msra.mxu0 %v462
    %476 = vmatpush.msra.mxu0 %v461
    %477 = vmatpush.msra.mxu0 %v460
    %478 = vmatpush.msra.mxu0 %v459
    %479 = vmatpush.msra.mxu0 %v458
    %480 = vmatpush.msra.mxu0 %v457
    %481 = vmatpush.msra.mxu0 %v456
    %482 = vmatpush.msra.mxu0 %v455
    %483 = vmatpush.msra.mxu0 %v454
    %484 = vmatpush.msra.mxu0 %v453
    %485 = vmatpush.msra.mxu0 %v452
    %486 = vmatpush.msra.mxu0 %v451
    %487 = vmatpush.msra.mxu0 %v450
    %488 = vmatpush.msra.mxu0 %v449
    %489 = vmatmul.f32.gmra.mxu0 %v465
    %v490 = vpop.f32.mrf.mxu0
    %v491 = vadd.f32 %v472, %v490
    %492 = vdwg.mxu0
    %493 = vst [vmem:[#allocation3] sm:$0x1] %v491
    // Predicated region
    $region30: #{mlp_forward.1} parent=1 // pred_check
      _
    $region31: #{mlp_forward.1} parent=1 // pred_check_branch
      %495 = sbr.rel (0) target = $region33
    $region32: #{mlp_forward.1} parent=1 // pred_region
      %497 = vsyncadd [#allocation4], 0
      %s499 = sshll.u32 [#allocation3], 4
      %s500 = int_to_ptr.vmem [resolvable:$true] %s499
      %s501 = sshll.u32 %s7, 4
      %s502 = int_to_ptr.hbm [resolvable:$true] %s501
      %504 = dma.vmem_to_hbm [thread:$0]  %s500, 16, %s502, [#allocation4]
    $region33: #{mlp_forward.1} parent=1 // pred_fallthru
      _
    // Predicated region
    $region34: #{mlp_forward.1} parent=1 // pred_check
      _
    $region35: #{mlp_forward.1} parent=1 // pred_check_branch
      %506 = sbr.rel (0) target = $region37
    $region36: #{mlp_forward.1} parent=1 // pred_region
      %508 = dma.done [#allocation4], 16
    $region37: #{mlp_forward.1} parent=1 // pred_fallthru
      _
    %509 = vsyncpa [#allocation4], 1

</llo_original>
